<compile_context>
chip_gen: v7x
topology: tpu7x:2x2x1
jax: 0.10.0
libtpu: 0.0.40
codegen_flags: <defaults>
</compile_context>

<pallas_src>
import functools

import jax
import jax.numpy as jnp
from jax import lax
from jax.experimental import pallas as pl
from jax.experimental.pallas import tpu as pltpu


# ----------------------------- Pallas kernel ------------------------------ #
def _mlp_kernel(ue_ref, me_ref, w1u_ref, w1m_ref, b1_ref, w2_ref, b2_ref,
                w3_ref, b3_ref, wo_ref, out_ref):
    """3-layer MLP + output head for one batch tile.

    ue_ref / me_ref are batch-major (bm, E) tiles straight from the embedding
    gathers (no HBM concat/transpose).  Layer 1 contracts their feature axis
    against w1's feature axis, so the (features, batch) re-layout happens
    on-chip and the hidden activations / output keep batch on the lane axis
    (lane-dense stores).  Dropout = identity (eval mode).
    """
    f32 = jnp.float32
    # Contract feature axes: (H, E) x (bm, E) -> (H, bm); batch stays on lanes.
    dn = (((1,), (1,)), ((), ()))

    h = lax.dot_general(w1u_ref[...], ue_ref[...], dn, preferred_element_type=f32)
    h = h + lax.dot_general(w1m_ref[...], me_ref[...], dn, preferred_element_type=f32)
    h = jnp.maximum(h + b1_ref[...], 0.0).astype(w2_ref.dtype)        # (H1, bm)

    h = jnp.dot(w2_ref[...], h, preferred_element_type=f32)
    h = jnp.maximum(h + b2_ref[...], 0.0).astype(w3_ref.dtype)        # (H2, bm)

    h = jnp.dot(w3_ref[...], h, preferred_element_type=f32)
    h = jnp.maximum(h + b3_ref[...], 0.0)                             # (H3, bm) f32

    # Output head: VPU multiply + sublane reduce -> lane-dense (1, bm) store.
    out_ref[...] = jnp.sum(h * wo_ref[...], axis=0, keepdims=True)


# ------------------------------ wrapper ------------------------------------ #
def _round_up(x, m):
    return ((x + m - 1) // m) * m


def recommender_forward(params, user_ids, movie_ids, *, block_b=None,
                        compute_dtype=jnp.float32, x_buffer_count=2):
    """Predicted ratings, shape (B,) float32, matching the PyTorch forward."""
    E = params["user_embedding"].shape[1]
    H1 = params["w1"].shape[0]
    H2 = params["w2"].shape[0]
    H3 = params["w3"].shape[0]
    B = user_ids.shape[0]

    if block_b is None:
        # bf16 halves the x-tile bytes, so it can afford a bigger tile.
        block_b = 4096 if jnp.dtype(compute_dtype) == jnp.dtype(jnp.bfloat16) else 2048
    assert block_b >= 128 and block_b % 128 == 0, "batch tile must be lane-dense"

    # --- batch tiling: large tiles, clamped for small batches, tiles evened
    # --- out to minimise trailing pad, and >=2 "parallel" steps when cheap so
    # --- the batch axis can shard across v7x's two TensorCores.
    B_lane = _round_up(max(B, 1), 128)
    n_steps = -(-B_lane // min(block_b, B_lane))          # cdiv
    if n_steps == 1 and B_lane % 256 == 0:
        n_steps = 2
    bm = _round_up(-(-B_lane // n_steps), 128)
    B_pad = _round_up(B_lane, bm)
    grid = (B_pad // bm,)
    pad = B_pad - B

    # Glue: embedding gathers (nn.Embedding lookups) in plain JAX; ids padded
    # with 0 (a valid row) and the padded outputs are sliced off afterwards.
    uid = jnp.pad(user_ids, (0, pad))
    mid = jnp.pad(movie_ids, (0, pad))
    # Gathers stay batch-major; no concat / transpose is materialised in HBM.
    # Store tables in compute_dtype via prepare_params() so these casts are no-ops.
    ue = jnp.take(params["user_embedding"], uid, axis=0).astype(compute_dtype)   # (B_pad, E)
    me = jnp.take(params["movie_embedding"], mid, axis=0).astype(compute_dtype)  # (B_pad, E)

    # Weights in PyTorch (out, in) layout; layer-1 weight split into its
    # user/movie halves so no concat is ever needed.
    w1 = params["w1"].astype(compute_dtype)               # (H1, 2E)
    w1u, w1m = w1[:, :E], w1[:, E:]
    w2 = params["w2"].astype(compute_dtype)               # (H2, H1)
    w3 = params["w3"].astype(compute_dtype)               # (H3, H2)
    # Biases / output head stay f32 (accumulation + elementwise math is f32).
    b1 = params["b1"].reshape(H1, 1).astype(jnp.float32)
    b2 = params["b2"].reshape(H2, 1).astype(jnp.float32)
    b3 = params["b3"].reshape(H3, 1).astype(jnp.float32)
    wo = params["w_out"].reshape(H3, 1).astype(jnp.float32)

    act_bytes = jnp.dtype(compute_dtype).itemsize
    # Deeper x buffering only if requested (e.g. 3 on v5e when xprof shows
    # exposed x DMA per step); weights keep constant index maps -> no need.
    x_kwargs = {}
    if x_buffer_count > 2:
        x_kwargs["pipeline_mode"] = pl.Buffered(x_buffer_count)
    x_spec = lambda: pl.BlockSpec((bm, E), lambda i: (i, 0), **x_kwargs)
    full = lambda shape: pl.BlockSpec(shape, lambda i: (0, 0))

    # Explicit VMEM budget with ~2x headroom over the pipeline buffers,
    # resident weights and in-kernel temporaries (safe on v5e/v6e/v7x).
    vmem_est = (x_buffer_count * 2 * bm * E * act_bytes        # ue/me buffers
                + 2 * bm * 4                                   # (1, bm) output buffers
                + (w1.size + w2.size + w3.size) * act_bytes
                + (H1 + H2 + H3 + H3) * 4
                + 4 * bm * (2 * H1 + H2 + H3))                 # generous f32 temps
    vmem_limit = int(min(max(2 * vmem_est, 32 * 2 ** 20), 48 * 2 ** 20))

    cost = pl.CostEstimate(
        flops=2 * B_pad * (2 * E * H1 + H1 * H2 + H2 * H3 + H3),
        transcendentals=0,
        bytes_accessed=(2 * B_pad * E + w1.size + w2.size + w3.size) * act_bytes
        + (H1 + H2 + H3 + H3) * 4
        + B_pad * 4,
    )

    out = pl.pallas_call(
        _mlp_kernel,
        out_shape=jax.ShapeDtypeStruct((1, B_pad), jnp.float32),
        grid_spec=pltpu.PrefetchScalarGridSpec(
            num_scalar_prefetch=0,
            grid=grid,
            in_specs=[
                x_spec(),               # user embeddings   (bm, E)
                x_spec(),               # movie embeddings  (bm, E)
                full((H1, E)),          # w1[:, :E]
                full((H1, E)),          # w1[:, E:]
                full((H1, 1)),          # b1
                full((H2, H1)),         # w2
                full((H2, 1)),          # b2
                full((H3, H2)),         # w3
                full((H3, 1)),          # b3
                full((H3, 1)),          # w_out (column)
            ],
            out_specs=pl.BlockSpec((1, bm), lambda i: (0, i)),  # lane-dense
        ),
        compiler_params=pltpu.CompilerParams(
            dimension_semantics=("parallel",),
            vmem_limit_bytes=vmem_limit,
        ),
        cost_estimate=cost,
    )(ue, me, w1u, w1m, b1, w2, b2, w3, b3, wo)

    mlp_out = out[0, :B]

    # Rating-bias terms added outside the kernel (single fused XLA op); keeps
    # narrow (bm,1)/(1,1) operands out of the hot loop.
    ub = jnp.take(params["user_bias"], user_ids, axis=0)[:, 0].astype(jnp.float32)
    mb = jnp.take(params["movie_bias"], movie_ids, axis=0)[:, 0].astype(jnp.float32)
    return (mlp_out + params["b_out"][0].astype(jnp.float32) + ub + mb
            + params["global_bias"][0].astype(jnp.float32))


# ----------------------- parameter storage helpers ------------------------- #
def prepare_params(params, compute_dtype=jnp.bfloat16):
    """Cast the big HBM-resident tensors (embedding tables, MLP weights) to the
    compute dtype once, so the gathers and weight DMAs read half the bytes.
    Biases / head / rating-bias tables stay f32 (tiny, math stays f32)."""
    out = dict(params)
    for k in ("user_embedding", "movie_embedding", "w1", "w2", "w3"):
        out[k] = params[k].astype(compute_dtype)
    return out


# ------------------------- deterministic init ------------------------------ #
def _xavier_uniform(key, shape):
    # PyTorch xavier_uniform_ on 2D: fan_out = shape[0], fan_in = shape[1]
    fan_out, fan_in = shape
    bound = (6.0 / (fan_in + fan_out)) ** 0.5
    return jax.random.uniform(key, shape, jnp.float32, -bound, bound)


def init_params(key, num_users, num_movies, embedding_dim=64,
                hidden_dims=(128, 64, 32)):
    H1, H2, H3 = hidden_dims
    E = embedding_dim
    ks = jax.random.split(key, 6)
    return {
        "user_embedding": _xavier_uniform(ks[0], (num_users, E)),
        "movie_embedding": _xavier_uniform(ks[1], (num_movies, E)),
        "user_bias": jnp.zeros((num_users, 1), jnp.float32),
        "movie_bias": jnp.zeros((num_movies, 1), jnp.float32),
        "global_bias": jnp.zeros((1,), jnp.float32),
        # nn.Linear weights kept in PyTorch (out_features, in_features) layout.
        "w1": _xavier_uniform(ks[2], (H1, 2 * E)),
        "b1": jnp.zeros((H1,), jnp.float32),
        "w2": _xavier_uniform(ks[3], (H2, H1)),
        "b2": jnp.zeros((H2,), jnp.float32),
        "w3": _xavier_uniform(ks[4], (H3, H2)),
        "b3": jnp.zeros((H3,), jnp.float32),
        "w_out": _xavier_uniform(ks[5], (1, H3)),
        "b_out": jnp.zeros((1,), jnp.float32),
    }


# Pure-JAX reference for correctness checking (PyTorch semantics).
def reference_forward(params, user_ids, movie_ids):
    ue = jnp.take(params["user_embedding"], user_ids, axis=0)
    me = jnp.take(params["movie_embedding"], movie_ids, axis=0)
    ub = jnp.take(params["user_bias"], user_ids, axis=0)[:, 0]
    mb = jnp.take(params["movie_bias"], movie_ids, axis=0)[:, 0]
    x = jnp.concatenate([ue, me], axis=-1)
    x = jnp.maximum(x @ params["w1"].T + params["b1"], 0.0)
    x = jnp.maximum(x @ params["w2"].T + params["b2"], 0.0)
    x = jnp.maximum(x @ params["w3"].T + params["b3"], 0.0)
    mlp_out = (x @ params["w_out"].T)[:, 0] + params["b_out"][0]
    return mlp_out + ub + mb + params["global_bias"][0]


if __name__ == "__main__":
    num_users, num_movies = 100, 150
    embedding_dim = 64
    hidden_dims = (128, 64, 32)
    batch = 200   # NOT a multiple of 128 -> exercises clamping + padding logic

    key = jax.random.PRNGKey(0)
    k_params, k_u, k_m = jax.random.split(key, 3)
    params = init_params(k_params, num_users, num_movies, embedding_dim, hidden_dims)

    user_ids = jax.random.randint(k_u, (batch,), 0, num_users, dtype=jnp.int32)
    movie_ids = jax.random.randint(k_m, (batch,), 0, num_movies, dtype=jnp.int32)

    ref = reference_forward(params, user_ids, movie_ids)

    # f32 path (default 2048 tile auto-clamps to 128; 2 parallel grid steps).
    fwd_f32 = jax.jit(functools.partial(
        recommender_forward, compute_dtype=jnp.float32))
    pred_f32 = jax.block_until_ready(fwd_f32(params, user_ids, movie_ids))
    assert pred_f32.shape == (batch,)
    assert jnp.allclose(pred_f32, ref, atol=1e-3, rtol=1e-3), (pred_f32, ref)

    # bf16 storage + MXU compute (tables/weights stored bf16 -> half the HBM
    # bytes for the gathers); accumulation and elementwise math stay f32.
    params_bf16 = prepare_params(params, jnp.bfloat16)
    fwd_bf16 = jax.jit(functools.partial(
        recommender_forward, compute_dtype=jnp.bfloat16))
    pred_bf16 = jax.block_until_ready(fwd_bf16(params_bf16, user_ids, movie_ids))
    assert pred_bf16.shape == (batch,)
    assert jnp.allclose(pred_bf16, ref, atol=5e-2, rtol=5e-2), (pred_bf16, ref)

    print("KERNEL_OK")
</pallas_src>

<mosaic_0001>
module attributes {stable_mosaic.version = 11 : i64} {
  func.func @_mlp_kernel(%arg0: i32, %arg1: memref<128x64xf32, #tpu.memory_space<vmem>>, %arg2: memref<128x64xf32, #tpu.memory_space<vmem>>, %arg3: memref<128x64xf32, #tpu.memory_space<vmem>>, %arg4: memref<128x64xf32, #tpu.memory_space<vmem>>, %arg5: memref<128x1xf32, #tpu.memory_space<vmem>>, %arg6: memref<64x128xf32, #tpu.memory_space<vmem>>, %arg7: memref<64x1xf32, #tpu.memory_space<vmem>>, %arg8: memref<32x64xf32, #tpu.memory_space<vmem>>, %arg9: memref<32x1xf32, #tpu.memory_space<vmem>>, %arg10: memref<32x1xf32, #tpu.memory_space<vmem>>, %arg11: memref<1x128xf32, #tpu.memory_space<vmem>>) attributes {dimension_semantics = [#tpu.dimension_semantics<parallel>], iteration_bounds = array<i64: 2>, scalar_prefetch = 0 : i64, scratch_operands = 0 : i64, tpu.core_type = #tpu.core_type<tc>, window_params = [{transform_indices = @transform_0, window_bounds = array<i64: 128, 64>}, {transform_indices = @transform_1, window_bounds = array<i64: 128, 64>}, {pipeline_mode = #tpu.pipeline_mode<synchronous>, transform_indices = @transform_2, window_bounds = array<i64: 128, 64>}, {pipeline_mode = #tpu.pipeline_mode<synchronous>, transform_indices = @transform_3, window_bounds = array<i64: 128, 64>}, {pipeline_mode = #tpu.pipeline_mode<synchronous>, transform_indices = @transform_4, window_bounds = array<i64: 128, 1>}, {pipeline_mode = #tpu.pipeline_mode<synchronous>, transform_indices = @transform_5, window_bounds = array<i64: 64, 128>}, {pipeline_mode = #tpu.pipeline_mode<synchronous>, transform_indices = @transform_6, window_bounds = array<i64: 64, 1>}, {pipeline_mode = #tpu.pipeline_mode<synchronous>, transform_indices = @transform_7, window_bounds = array<i64: 32, 64>}, {pipeline_mode = #tpu.pipeline_mode<synchronous>, transform_indices = @transform_8, window_bounds = array<i64: 32, 1>}, {pipeline_mode = #tpu.pipeline_mode<synchronous>, transform_indices = @transform_9, window_bounds = array<i64: 32, 1>}, {transform_indices = @transform_10, window_bounds = array<i64: 1, 128>}]} {
    %c0 = arith.constant 0 : index
    %c0_0 = arith.constant 0 : index
    %0 = vector.load %arg3[%c0, %c0_0] : memref<128x64xf32, #tpu.memory_space<vmem>>, vector<128x64xf32>
    %c0_1 = arith.constant 0 : index
    %c0_2 = arith.constant 0 : index
    %1 = vector.load %arg1[%c0_1, %c0_2] : memref<128x64xf32, #tpu.memory_space<vmem>>, vector<128x64xf32>
    %cst = arith.constant dense<0.000000e+00> : vector<128x128xf32>
    %2 = tpu.matmul %0, %1, %cst {dimension_numbers = #tpu.dot_dimension_numbers<[1], [1], [0], [0], [0, 0, 1, 0], [], []>} : vector<128x64xf32>, vector<128x64xf32>, vector<128x128xf32> -> vector<128x128xf32>
    %c0_3 = arith.constant 0 : index
    %c0_4 = arith.constant 0 : index
    %3 = vector.load %arg4[%c0_3, %c0_4] : memref<128x64xf32, #tpu.memory_space<vmem>>, vector<128x64xf32>
    %c0_5 = arith.constant 0 : index
    %c0_6 = arith.constant 0 : index
    %4 = vector.load %arg2[%c0_5, %c0_6] : memref<128x64xf32, #tpu.memory_space<vmem>>, vector<128x64xf32>
    %cst_7 = arith.constant dense<0.000000e+00> : vector<128x128xf32>
    %5 = tpu.matmul %3, %4, %cst_7 {dimension_numbers = #tpu.dot_dimension_numbers<[1], [1], [0], [0], [0, 0, 1, 0], [], []>} : vector<128x64xf32>, vector<128x64xf32>, vector<128x128xf32> -> vector<128x128xf32>
    %6 = arith.addf %2, %5 : vector<128x128xf32>
    %c0_8 = arith.constant 0 : index
    %c0_9 = arith.constant 0 : index
    %7 = vector.load %arg5[%c0_8, %c0_9] : memref<128x1xf32, #tpu.memory_space<vmem>>, vector<128x1xf32>
    %8 = vector.broadcast %7 : vector<128x1xf32> to vector<128x128xf32>
    %9 = arith.addf %6, %8 : vector<128x128xf32>
    %cst_10 = arith.constant 0.000000e+00 : f32
    %10 = vector.broadcast %cst_10 : f32 to vector<128x128xf32>
    %11 = arith.maximumf %9, %10 : vector<128x128xf32>
    %c0_11 = arith.constant 0 : index
    %c0_12 = arith.constant 0 : index
    %12 = vector.load %arg6[%c0_11, %c0_12] : memref<64x128xf32, #tpu.memory_space<vmem>>, vector<64x128xf32>
    %cst_13 = arith.constant dense<0.000000e+00> : vector<64x128xf32>
    %13 = tpu.matmul %12, %11, %cst_13 {dimension_numbers = #tpu.dot_dimension_numbers<[1], [0], [0], [1], [0, 0, 1, 1], [], []>} : vector<64x128xf32>, vector<128x128xf32>, vector<64x128xf32> -> vector<64x128xf32>
    %c0_14 = arith.constant 0 : index
    %c0_15 = arith.constant 0 : index
    %14 = vector.load %arg7[%c0_14, %c0_15] : memref<64x1xf32, #tpu.memory_space<vmem>>, vector<64x1xf32>
    %15 = vector.broadcast %14 : vector<64x1xf32> to vector<64x128xf32>
    %16 = arith.addf %13, %15 : vector<64x128xf32>
    %cst_16 = arith.constant 0.000000e+00 : f32
    %17 = vector.broadcast %cst_16 : f32 to vector<64x128xf32>
    %18 = arith.maximumf %16, %17 : vector<64x128xf32>
    %c0_17 = arith.constant 0 : index
    %c0_18 = arith.constant 0 : index
    %19 = vector.load %arg8[%c0_17, %c0_18] : memref<32x64xf32, #tpu.memory_space<vmem>>, vector<32x64xf32>
    %cst_19 = arith.constant dense<0.000000e+00> : vector<32x128xf32>
    %20 = tpu.matmul %19, %18, %cst_19 {dimension_numbers = #tpu.dot_dimension_numbers<[1], [0], [0], [1], [0, 0, 1, 1], [], []>} : vector<32x64xf32>, vector<64x128xf32>, vector<32x128xf32> -> vector<32x128xf32>
    %c0_20 = arith.constant 0 : index
    %c0_21 = arith.constant 0 : index
    %21 = vector.load %arg9[%c0_20, %c0_21] : memref<32x1xf32, #tpu.memory_space<vmem>>, vector<32x1xf32>
    %22 = vector.broadcast %21 : vector<32x1xf32> to vector<32x128xf32>
    %23 = arith.addf %20, %22 : vector<32x128xf32>
    %cst_22 = arith.constant 0.000000e+00 : f32
    %24 = vector.broadcast %cst_22 : f32 to vector<32x128xf32>
    %25 = arith.maximumf %23, %24 : vector<32x128xf32>
    %c0_23 = arith.constant 0 : index
    %c0_24 = arith.constant 0 : index
    %26 = vector.load %arg10[%c0_23, %c0_24] : memref<32x1xf32, #tpu.memory_space<vmem>>, vector<32x1xf32>
    %27 = vector.broadcast %26 : vector<32x1xf32> to vector<32x128xf32>
    %28 = arith.mulf %25, %27 : vector<32x128xf32>
    %cst_25 = arith.constant dense<0.000000e+00> : vector<128xf32>
    %29 = vector.multi_reduction <add>, %28, %cst_25 [0] : vector<32x128xf32> to vector<128xf32>
    %30 = vector.shape_cast %29 : vector<128xf32> to vector<1x128xf32>
    %c0_26 = arith.constant 0 : index
    %c0_27 = arith.constant 0 : index
    %31 = vector.load %arg11[%c0_26, %c0_27] : memref<1x128xf32, #tpu.memory_space<vmem>>, vector<1x128xf32>
    tpu.vector_store %arg11[%c0_26, %c0_27], %30 {strides = array<i32>} : memref<1x128xf32, #tpu.memory_space<vmem>>, vector<1x128xf32>,
    return
  }
  func.func @transform_0(%arg0: i32) -> (i32, i32) {
    %c0_i32 = arith.constant 0 : i32
    %c0_i32_0 = arith.constant 0 : i32
    return %arg0, %c0_i32 : i32, i32
  }
  func.func @transform_1(%arg0: i32) -> (i32, i32) {
    %c0_i32 = arith.constant 0 : i32
    %c0_i32_0 = arith.constant 0 : i32
    return %arg0, %c0_i32 : i32, i32
  }
  func.func @transform_2(%arg0: i32) -> (i32, i32) {
    %c0_i32 = arith.constant 0 : i32
    %c0_i32_0 = arith.constant 0 : i32
    %c0_i32_1 = arith.constant 0 : i32
    return %c0_i32, %c0_i32_0 : i32, i32
  }
  func.func @transform_3(%arg0: i32) -> (i32, i32) {
    %c0_i32 = arith.constant 0 : i32
    %c0_i32_0 = arith.constant 0 : i32
    %c0_i32_1 = arith.constant 0 : i32
    return %c0_i32, %c0_i32_0 : i32, i32
  }
  func.func @transform_4(%arg0: i32) -> (i32, i32) {
    %c0_i32 = arith.constant 0 : i32
    %c0_i32_0 = arith.constant 0 : i32
    %c0_i32_1 = arith.constant 0 : i32
    return %c0_i32, %c0_i32_0 : i32, i32
  }
  func.func @transform_5(%arg0: i32) -> (i32, i32) {
    %c0_i32 = arith.constant 0 : i32
    %c0_i32_0 = arith.constant 0 : i32
    %c0_i32_1 = arith.constant 0 : i32
    return %c0_i32, %c0_i32_0 : i32, i32
  }
  func.func @transform_6(%arg0: i32) -> (i32, i32) {
    %c0_i32 = arith.constant 0 : i32
    %c0_i32_0 = arith.constant 0 : i32
    %c0_i32_1 = arith.constant 0 : i32
    return %c0_i32, %c0_i32_0 : i32, i32
  }
  func.func @transform_7(%arg0: i32) -> (i32, i32) {
    %c0_i32 = arith.constant 0 : i32
    %c0_i32_0 = arith.constant 0 : i32
    %c0_i32_1 = arith.constant 0 : i32
    return %c0_i32, %c0_i32_0 : i32, i32
  }
  func.func @transform_8(%arg0: i32) -> (i32, i32) {
    %c0_i32 = arith.constant 0 : i32
    %c0_i32_0 = arith.constant 0 : i32
    %c0_i32_1 = arith.constant 0 : i32
    return %c0_i32, %c0_i32_0 : i32, i32
  }
  func.func @transform_9(%arg0: i32) -> (i32, i32) {
    %c0_i32 = arith.constant 0 : i32
    %c0_i32_0 = arith.constant 0 : i32
    %c0_i32_1 = arith.constant 0 : i32
    return %c0_i32, %c0_i32_0 : i32, i32
  }
  func.func @transform_10(%arg0: i32) -> (i32, i32) {
    %c0_i32 = arith.constant 0 : i32
    %c0_i32_0 = arith.constant 0 : i32
    return %c0_i32, %arg0 : i32, i32
  }
}

</mosaic_0001>

<llo_original>
// kernel: recommender_forward.1
$region0: #{recommender_forward.1}
  #allocation0 [shape = 'u32[]', space=smem, size = 0x4, offset = 0x4, fixed_abs, tag = 'smem constant byte address 0x4 - core index']
  #allocation1 [shape = 'u32[144,128]{1,0:T(1,128)}', space=vmem, size = 0x12000, scoped, tag = 'internal scratch']
  %s0 = inlined_call_operand.vmem [shape: f32[256,64], index: 0, kind: input, shape index: {}]
  %s1 = inlined_call_operand.vmem [shape: f32[256,64], index: 1, kind: input, shape index: {}]
  %s2 = inlined_call_operand.vmem [shape: f32[128,64], index: 2, kind: input, shape index: {}]
  %s3 = inlined_call_operand.vmem [shape: f32[128,64], index: 3, kind: input, shape index: {}]
  %s4 = inlined_call_operand.vmem [shape: f32[128,1], index: 4, kind: input, shape index: {}]
  %s5 = inlined_call_operand.vmem [shape: f32[64,128], index: 5, kind: input, shape index: {}]
  %s6 = inlined_call_operand.vmem [shape: f32[64,1], index: 6, kind: input, shape index: {}]
  %s7 = inlined_call_operand.vmem [shape: f32[32,64], index: 7, kind: input, shape index: {}]
  %s8 = inlined_call_operand.vmem [shape: f32[32,1], index: 8, kind: input, shape index: {}]
  %s9 = inlined_call_operand.vmem [shape: f32[32,1], index: 9, kind: input, shape index: {}]
  %s10 = inlined_call_operand.vmem [shape: f32[1,256], index: 10, kind: output, shape index: {}]
  %s11 = sld [smem:[#allocation0]]
  $region73: #{recommender_forward.1} parent=0
    _
  %s13 = ssub.s32 1, %s11
  %s14 = scalar_select 0, %s13, %s11
  loop: start=0, step=1, limit=4
  $region2: #{recommender_forward.1} parent=0 // loop_pre_header
    _
  $region3: #{recommender_forward.1} parent=0 // loop_header
    %s16 = sphi 0, %s20
    %p17 = scmp.ge.s32.totalorder %s16, 4
    %s26 = sphi 0, %s28
    %s29 = sphi 0, %s26
    %s30 = sphi 0, %s29
    %s46 = sphi 0, %s30
    %s52 = sphi 0, %s54
    %s55 = sphi 0, %s52
    %s56 = sphi 0, %s55
    %s72 = sphi 0, %s56
    %s76 = sphi 0, %s76
    %s78 = sphi 0, %s76
    %s79 = sphi 0, %s78
    %s93 = sphi 0, %s79
    %s97 = sphi 0, %s97
    %s99 = sphi 0, %s97
    %s100 = sphi 0, %s99
    %s114 = sphi 0, %s100
    %s118 = sphi 0, %s118
    %s120 = sphi 0, %s118
    %s121 = sphi 0, %s120
    %s135 = sphi 0, %s121
    %s139 = sphi 0, %s139
    %s141 = sphi 0, %s139
    %s142 = sphi 0, %s141
    %s156 = sphi 0, %s142
    %s160 = sphi 0, %s160
    %s162 = sphi 0, %s160
    %s163 = sphi 0, %s162
    %s177 = sphi 0, %s163
    %s181 = sphi 0, %s181
    %s183 = sphi 0, %s181
    %s184 = sphi 0, %s183
    %s198 = sphi 0, %s184
    %s202 = sphi 0, %s202
    %s204 = sphi 0, %s202
    %s205 = sphi 0, %s204
    %s219 = sphi 0, %s205
    %s223 = sphi 0, %s223
    %s225 = sphi 0, %s223
    %s226 = sphi 0, %s225
    %s240 = sphi 0, %s226
    %s246 = sphi 0, %s248
    %s249 = sphi 0, %s246
    %s250 = sphi 0, %s249
    %s266 = sphi 0, %s250
  $region4: #{recommender_forward.1} parent=0 // loop_header_branch
    %19 = sbr.rel (%p17) target = $region8
  $region5: #{recommender_forward.1} parent=0 // loop_body
    %s21 = ssub.s32 %s16, 1
    %s22 = ssub.s32 %s16, 2
    %s23 = sadd.s32 %s16, 1
    %s24 = ssub.s32 %s16, %s23
    %p25 = scmp.eq.s32.totalorder %s24, 0
    %s27 = sadd.s32 %s26, 1
    %s28 = scalar_select %p25, %s26, %s27
    %p31 = pneg %p25
    %p32 = scmp.eq.s32.totalorder %s16, 1
    %p33 = por %p31, %p32
    %p34 = scmp.ne.s32.totalorder %s26, %s29
    %p35 = scmp.eq.s32.totalorder %s16, 0
    %p36 = por %p34, %p35
    %p37 = scmp.ne.s32.totalorder %s26, %s29
    %p38 = scmp.eq.s32.totalorder %s21, 1
    %p39 = por %p37, %p38
    %p40 = scmp.ne.s32.totalorder %s29, %s30
    %p41 = scmp.eq.s32.totalorder %s21, 0
    %p42 = por %p40, %p41
    %p43 = scmp.ne.s32.totalorder %s29, %s30
    %p44 = scmp.eq.s32.totalorder %s22, 1
    %p45 = por %p43, %p44
    %p47 = scmp.ne.s32.totalorder %s30, %s46
    %p48 = scmp.eq.s32.totalorder %s22, 0
    %p49 = por %p47, %p48
    %s50 = ssub.s32 %s16, %s23
    %p51 = scmp.eq.s32.totalorder %s50, 0
    %s53 = sadd.s32 %s52, 1
    %s54 = scalar_select %p51, %s52, %s53
    %p57 = pneg %p51
    %p58 = scmp.eq.s32.totalorder %s16, 1
    %p59 = por %p57, %p58
    %p60 = scmp.ne.s32.totalorder %s52, %s55
    %p61 = scmp.eq.s32.totalorder %s16, 0
    %p62 = por %p60, %p61
    %p63 = scmp.ne.s32.totalorder %s52, %s55
    %p64 = scmp.eq.s32.totalorder %s21, 1
    %p65 = por %p63, %p64
    %p66 = scmp.ne.s32.totalorder %s55, %s56
    %p67 = scmp.eq.s32.totalorder %s21, 0
    %p68 = por %p66, %p67
    %p69 = scmp.ne.s32.totalorder %s55, %s56
    %p70 = scmp.eq.s32.totalorder %s22, 1
    %p71 = por %p69, %p70
    %p73 = scmp.ne.s32.totalorder %s56, %s72
    %p74 = scmp.eq.s32.totalorder %s22, 0
    %p75 = por %p73, %p74
    %s77 = sadd.s32 %s76, 1
    %p80 = scmp.eq.s32.totalorder %s16, 1
    %p81 = scmp.ne.s32.totalorder %s76, %s78
    %p82 = scmp.eq.s32.totalorder %s16, 0
    %p83 = por %p81, %p82
    %p84 = scmp.ne.s32.totalorder %s76, %s78
    %p85 = scmp.eq.s32.totalorder %s21, 1
    %p86 = por %p84, %p85
    %p87 = scmp.ne.s32.totalorder %s78, %s79
    %p88 = scmp.eq.s32.totalorder %s21, 0
    %p89 = por %p87, %p88
    %p90 = scmp.ne.s32.totalorder %s78, %s79
    %p91 = scmp.eq.s32.totalorder %s22, 1
    %p92 = por %p90, %p91
    %p94 = scmp.ne.s32.totalorder %s79, %s93
    %p95 = scmp.eq.s32.totalorder %s22, 0
    %p96 = por %p94, %p95
    %s98 = sadd.s32 %s97, 1
    %p101 = scmp.eq.s32.totalorder %s16, 1
    %p102 = scmp.ne.s32.totalorder %s97, %s99
    %p103 = scmp.eq.s32.totalorder %s16, 0
    %p104 = por %p102, %p103
    %p105 = scmp.ne.s32.totalorder %s97, %s99
    %p106 = scmp.eq.s32.totalorder %s21, 1
    %p107 = por %p105, %p106
    %p108 = scmp.ne.s32.totalorder %s99, %s100
    %p109 = scmp.eq.s32.totalorder %s21, 0
    %p110 = por %p108, %p109
    %p111 = scmp.ne.s32.totalorder %s99, %s100
    %p112 = scmp.eq.s32.totalorder %s22, 1
    %p113 = por %p111, %p112
    %p115 = scmp.ne.s32.totalorder %s100, %s114
    %p116 = scmp.eq.s32.totalorder %s22, 0
    %p117 = por %p115, %p116
    %s119 = sadd.s32 %s118, 1
    %p122 = scmp.eq.s32.totalorder %s16, 1
    %p123 = scmp.ne.s32.totalorder %s118, %s120
    %p124 = scmp.eq.s32.totalorder %s16, 0
    %p125 = por %p123, %p124
    %p126 = scmp.ne.s32.totalorder %s118, %s120
    %p127 = scmp.eq.s32.totalorder %s21, 1
    %p128 = por %p126, %p127
    %p129 = scmp.ne.s32.totalorder %s120, %s121
    %p130 = scmp.eq.s32.totalorder %s21, 0
    %p131 = por %p129, %p130
    %p132 = scmp.ne.s32.totalorder %s120, %s121
    %p133 = scmp.eq.s32.totalorder %s22, 1
    %p134 = por %p132, %p133
    %p136 = scmp.ne.s32.totalorder %s121, %s135
    %p137 = scmp.eq.s32.totalorder %s22, 0
    %p138 = por %p136, %p137
    %s140 = sadd.s32 %s139, 1
    %p143 = scmp.eq.s32.totalorder %s16, 1
    %p144 = scmp.ne.s32.totalorder %s139, %s141
    %p145 = scmp.eq.s32.totalorder %s16, 0
    %p146 = por %p144, %p145
    %p147 = scmp.ne.s32.totalorder %s139, %s141
    %p148 = scmp.eq.s32.totalorder %s21, 1
    %p149 = por %p147, %p148
    %p150 = scmp.ne.s32.totalorder %s141, %s142
    %p151 = scmp.eq.s32.totalorder %s21, 0
    %p152 = por %p150, %p151
    %p153 = scmp.ne.s32.totalorder %s141, %s142
    %p154 = scmp.eq.s32.totalorder %s22, 1
    %p155 = por %p153, %p154
    %p157 = scmp.ne.s32.totalorder %s142, %s156
    %p158 = scmp.eq.s32.totalorder %s22, 0
    %p159 = por %p157, %p158
    %s161 = sadd.s32 %s160, 1
    %p164 = scmp.eq.s32.totalorder %s16, 1
    %p165 = scmp.ne.s32.totalorder %s160, %s162
    %p166 = scmp.eq.s32.totalorder %s16, 0
    %p167 = por %p165, %p166
    %p168 = scmp.ne.s32.totalorder %s160, %s162
    %p169 = scmp.eq.s32.totalorder %s21, 1
    %p170 = por %p168, %p169
    %p171 = scmp.ne.s32.totalorder %s162, %s163
    %p172 = scmp.eq.s32.totalorder %s21, 0
    %p173 = por %p171, %p172
    %p174 = scmp.ne.s32.totalorder %s162, %s163
    %p175 = scmp.eq.s32.totalorder %s22, 1
    %p176 = por %p174, %p175
    %p178 = scmp.ne.s32.totalorder %s163, %s177
    %p179 = scmp.eq.s32.totalorder %s22, 0
    %p180 = por %p178, %p179
    %s182 = sadd.s32 %s181, 1
    %p185 = scmp.eq.s32.totalorder %s16, 1
    %p186 = scmp.ne.s32.totalorder %s181, %s183
    %p187 = scmp.eq.s32.totalorder %s16, 0
    %p188 = por %p186, %p187
    %p189 = scmp.ne.s32.totalorder %s181, %s183
    %p190 = scmp.eq.s32.totalorder %s21, 1
    %p191 = por %p189, %p190
    %p192 = scmp.ne.s32.totalorder %s183, %s184
    %p193 = scmp.eq.s32.totalorder %s21, 0
    %p194 = por %p192, %p193
    %p195 = scmp.ne.s32.totalorder %s183, %s184
    %p196 = scmp.eq.s32.totalorder %s22, 1
    %p197 = por %p195, %p196
    %p199 = scmp.ne.s32.totalorder %s184, %s198
    %p200 = scmp.eq.s32.totalorder %s22, 0
    %p201 = por %p199, %p200
    %s203 = sadd.s32 %s202, 1
    %p206 = scmp.eq.s32.totalorder %s16, 1
    %p207 = scmp.ne.s32.totalorder %s202, %s204
    %p208 = scmp.eq.s32.totalorder %s16, 0
    %p209 = por %p207, %p208
    %p210 = scmp.ne.s32.totalorder %s202, %s204
    %p211 = scmp.eq.s32.totalorder %s21, 1
    %p212 = por %p210, %p211
    %p213 = scmp.ne.s32.totalorder %s204, %s205
    %p214 = scmp.eq.s32.totalorder %s21, 0
    %p215 = por %p213, %p214
    %p216 = scmp.ne.s32.totalorder %s204, %s205
    %p217 = scmp.eq.s32.totalorder %s22, 1
    %p218 = por %p216, %p217
    %p220 = scmp.ne.s32.totalorder %s205, %s219
    %p221 = scmp.eq.s32.totalorder %s22, 0
    %p222 = por %p220, %p221
    %s224 = sadd.s32 %s223, 1
    %p227 = scmp.eq.s32.totalorder %s16, 1
    %p228 = scmp.ne.s32.totalorder %s223, %s225
    %p229 = scmp.eq.s32.totalorder %s16, 0
    %p230 = por %p228, %p229
    %p231 = scmp.ne.s32.totalorder %s223, %s225
    %p232 = scmp.eq.s32.totalorder %s21, 1
    %p233 = por %p231, %p232
    %p234 = scmp.ne.s32.totalorder %s225, %s226
    %p235 = scmp.eq.s32.totalorder %s21, 0
    %p236 = por %p234, %p235
    %p237 = scmp.ne.s32.totalorder %s225, %s226
    %p238 = scmp.eq.s32.totalorder %s22, 1
    %p239 = por %p237, %p238
    %p241 = scmp.ne.s32.totalorder %s226, %s240
    %p242 = scmp.eq.s32.totalorder %s22, 0
    %p243 = por %p241, %p242
    %s244 = ssub.s32 %s16, %s23
    %p245 = scmp.eq.s32.totalorder %s244, 0
    %s247 = sadd.s32 %s246, 1
    %s248 = scalar_select %p245, %s246, %s247
    %p251 = pneg %p245
    %p252 = scmp.eq.s32.totalorder %s16, 1
    %p253 = por %p251, %p252
    %p254 = scmp.ne.s32.totalorder %s246, %s249
    %p255 = scmp.eq.s32.totalorder %s16, 0
    %p256 = por %p254, %p255
    %p257 = scmp.ne.s32.totalorder %s246, %s249
    %p258 = scmp.eq.s32.totalorder %s21, 1
    %p259 = por %p257, %p258
    %p260 = scmp.ne.s32.totalorder %s249, %s250
    %p261 = scmp.eq.s32.totalorder %s21, 0
    %p262 = por %p260, %p261
    %p263 = scmp.ne.s32.totalorder %s249, %s250
    %p264 = scmp.eq.s32.totalorder %s22, 1
    %p265 = por %p263, %p264
    %p267 = scmp.ne.s32.totalorder %s250, %s266
    %p268 = scmp.eq.s32.totalorder %s22, 0
    %p269 = por %p267, %p268
    %p270 = scmp.le.s32.totalorder 1, %s16
    %p271 = scmp.lt.s32.totalorder %s16, 3
    %p272 = pnand %p270, %p271
    %p273 = pneg %p272
    // Predicated region
    $region9: #{recommender_forward.1} parent=5 // pred_check
      _
    $region10: #{recommender_forward.1} parent=5 // pred_check_branch
      %275 = sbr.rel (%p272) target = $region12
    $region11: #{recommender_forward.1} parent=5 // pred_region
      %s276 = ssub.s32 %s16, 1
      // Predicated region
      $region13: #{recommender_forward.1} parent=11 // pred_check
        %p277 = pneg %p89
      $region14: #{recommender_forward.1} parent=11 // pred_check_branch
        %279 = sbr.rel (%p277) target = $region16
      $region15: #{recommender_forward.1} parent=11 // pred_region
        _
      $region16: #{recommender_forward.1} parent=11 // pred_fallthru
        _
      // Predicated region
      $region17: #{recommender_forward.1} parent=11 // pred_check
        %p280 = pneg %p110
      $region18: #{recommender_forward.1} parent=11 // pred_check_branch
        %282 = sbr.rel (%p280) target = $region20
      $region19: #{recommender_forward.1} parent=11 // pred_region
        _
      $region20: #{recommender_forward.1} parent=11 // pred_fallthru
        _
      // Predicated region
      $region21: #{recommender_forward.1} parent=11 // pred_check
        %p283 = pneg %p131
      $region22: #{recommender_forward.1} parent=11 // pred_check_branch
        %285 = sbr.rel (%p283) target = $region24
      $region23: #{recommender_forward.1} parent=11 // pred_region
        _
      $region24: #{recommender_forward.1} parent=11 // pred_fallthru
        _
      // Predicated region
      $region25: #{recommender_forward.1} parent=11 // pred_check
        %p286 = pneg %p152
      $region26: #{recommender_forward.1} parent=11 // pred_check_branch
        %288 = sbr.rel (%p286) target = $region28
      $region27: #{recommender_forward.1} parent=11 // pred_region
        _
      $region28: #{recommender_forward.1} parent=11 // pred_fallthru
        _
      // Predicated region
      $region29: #{recommender_forward.1} parent=11 // pred_check
        %p289 = pneg %p173
      $region30: #{recommender_forward.1} parent=11 // pred_check_branch
        %291 = sbr.rel (%p289) target = $region32
      $region31: #{recommender_forward.1} parent=11 // pred_region
        _
      $region32: #{recommender_forward.1} parent=11 // pred_fallthru
        _
      // Predicated region
      $region33: #{recommender_forward.1} parent=11 // pred_check
        %p292 = pneg %p194
      $region34: #{recommender_forward.1} parent=11 // pred_check_branch
        %294 = sbr.rel (%p292) target = $region36
      $region35: #{recommender_forward.1} parent=11 // pred_region
        _
      $region36: #{recommender_forward.1} parent=11 // pred_fallthru
        _
      // Predicated region
      $region37: #{recommender_forward.1} parent=11 // pred_check
        %p295 = pneg %p215
      $region38: #{recommender_forward.1} parent=11 // pred_check_branch
        %297 = sbr.rel (%p295) target = $region40
      $region39: #{recommender_forward.1} parent=11 // pred_region
        _
      $region40: #{recommender_forward.1} parent=11 // pred_fallthru
        _
      // Predicated region
      $region41: #{recommender_forward.1} parent=11 // pred_check
        %p298 = pneg %p236
      $region42: #{recommender_forward.1} parent=11 // pred_check_branch
        %300 = sbr.rel (%p298) target = $region44
      $region43: #{recommender_forward.1} parent=11 // pred_region
        _
      $region44: #{recommender_forward.1} parent=11 // pred_fallthru
        _
    $region12: #{recommender_forward.1} parent=5 // pred_fallthru
      _
    %p301 = scmp.lt.s32.totalorder %s16, 2
    // Predicated region
    $region45: #{recommender_forward.1} parent=5 // pred_check
      %p302 = pneg %p301
    $region46: #{recommender_forward.1} parent=5 // pred_check_branch
      %304 = sbr.rel (%p302) target = $region48
    $region47: #{recommender_forward.1} parent=5 // pred_region
      // Predicated region
      $region49: #{recommender_forward.1} parent=47 // pred_check
        %p305 = pneg %p36
      $region50: #{recommender_forward.1} parent=47 // pred_check_branch
        %307 = sbr.rel (%p305) target = $region52
      $region51: #{recommender_forward.1} parent=47 // pred_region
        %s308 = smul.u32 16, %s16
        %p309 = scmp.lt.s32.totalorder %s308, 31
        %s310 = scalar_select %p309, %s308, 31
        %s311 = smul.addr %s310, 8
        %s312 = scalar_lea.vmem %s0, %s311
        %s313 = smul.u32 16, %s16
      $region52: #{recommender_forward.1} parent=47 // pred_fallthru
        _
      // Predicated region
      $region53: #{recommender_forward.1} parent=47 // pred_check
        %p314 = pneg %p62
      $region54: #{recommender_forward.1} parent=47 // pred_check_branch
        %316 = sbr.rel (%p314) target = $region56
      $region55: #{recommender_forward.1} parent=47 // pred_region
        %s317 = smul.u32 16, %s16
        %p318 = scmp.lt.s32.totalorder %s317, 31
        %s319 = scalar_select %p318, %s317, 31
        %s320 = smul.addr %s319, 8
        %s321 = scalar_lea.vmem %s1, %s320
        %s322 = smul.u32 16, %s16
      $region56: #{recommender_forward.1} parent=47 // pred_fallthru
        _
    $region48: #{recommender_forward.1} parent=5 // pred_fallthru
      _
    %p323 = scmp.le.s32.totalorder 1, %s16
    %p324 = scmp.lt.s32.totalorder %s16, 3
    %p325 = pnand %p323, %p324
    %p326 = pneg %p325
    // Predicated region
    $region57: #{recommender_forward.1} parent=5 // pred_check
      _
    $region58: #{recommender_forward.1} parent=5 // pred_check_branch
      %328 = sbr.rel (%p325) target = $region60
    $region59: #{recommender_forward.1} parent=5 // pred_region
      %s329 = ssub.s32 %s16, 1
      %s330 = smul.u32 16, %s21
      %p331 = scmp.lt.s32.totalorder %s330, 31
      %s332 = scalar_select %p331, %s330, 31
      %s333 = smul.addr %s332, 8
      %s334 = scalar_lea.vmem %s0, %s333
      %p335 = pneg %p42
      %p336 = pneg %p39
      %s337 = smul.u32 16, %s21
      %p338 = scmp.lt.s32.totalorder %s337, 31
      %s339 = scalar_select %p338, %s337, 31
      %s340 = smul.addr %s339, 8
      %s341 = scalar_lea.vmem %s1, %s340
      %p342 = pneg %p68
      %p343 = pneg %p65
      %p344 = pneg %p89
      %p345 = pneg %p86
      %p346 = pneg %p110
      %p347 = pneg %p107
      %p348 = pneg %p131
      %p349 = pneg %p128
      %p350 = pneg %p152
      %p351 = pneg %p149
      %p352 = pneg %p173
      %p353 = pneg %p170
      %p354 = pneg %p194
      %p355 = pneg %p191
      %p356 = pneg %p215
      %p357 = pneg %p212
      %p358 = pneg %p236
      %p359 = pneg %p233
      %p360 = pneg %p262
      %p361 = pneg %p259
      %p362 = scmp.lt.s32.totalorder %s21, 1
      %s363 = scalar_select %p362, %s21, 1
      %s364 = scalar_lea.vmem %s10, %s363
      %s365 = smul.u32 16, %s21
      %p366 = scmp.lt.s32.totalorder %s365, 31
      %s367 = scalar_select %p366, %s365, 31
      %s368 = smul.addr %s367, 8
      %s369 = scalar_lea.vmem %s0, %s368
      %s370 = smul.u32 16, %s21
      %s371 = smul.u32 16, %s21
      %p372 = scmp.lt.s32.totalorder %s371, 31
      %s373 = scalar_select %p372, %s371, 31
      %s374 = smul.addr %s373, 8
      %s375 = scalar_lea.vmem %s1, %s374
      %s376 = smul.u32 16, %s21
      %p377 = scmp.lt.s32.totalorder %s21, 1
      %s378 = scalar_select %p377, %s21, 1
      %s379 = scalar_lea.vmem %s10, %s378
      %v380 = vld [vmem:[%s2] sm:$0xff]
      %v381 = vld [vmem:[%s2 + $0x8] sm:$0xff]
      %v382 = vld [vmem:[%s2 + $0x10] sm:$0xff]
      %v383 = vld [vmem:[%s2 + $0x18] sm:$0xff]
      %v384 = vld [vmem:[%s2 + $0x20] sm:$0xff]
      %v385 = vld [vmem:[%s2 + $0x28] sm:$0xff]
      %v386 = vld [vmem:[%s2 + $0x30] sm:$0xff]
      %v387 = vld [vmem:[%s2 + $0x38] sm:$0xff]
      %v388 = vld [vmem:[%s2 + $0x40] sm:$0xff]
      %v389 = vld [vmem:[%s2 + $0x48] sm:$0xff]
      %v390 = vld [vmem:[%s2 + $0x50] sm:$0xff]
      %v391 = vld [vmem:[%s2 + $0x58] sm:$0xff]
      %v392 = vld [vmem:[%s2 + $0x60] sm:$0xff]
      %v393 = vld [vmem:[%s2 + $0x68] sm:$0xff]
      %v394 = vld [vmem:[%s2 + $0x70] sm:$0xff]
      %v395 = vld [vmem:[%s2 + $0x78] sm:$0xff]
      %v396 = vld [vmem:[%s369] sm:$0xff]
      %v397 = vld [vmem:[%s369 + $0x8] sm:$0xff]
      %v398 = vld [vmem:[%s369 + $0x10] sm:$0xff]
      %v399 = vld [vmem:[%s369 + $0x18] sm:$0xff]
      %v400 = vld [vmem:[%s369 + $0x20] sm:$0xff]
      %v401 = vld [vmem:[%s369 + $0x28] sm:$0xff]
      %v402 = vld [vmem:[%s369 + $0x30] sm:$0xff]
      %v403 = vld [vmem:[%s369 + $0x38] sm:$0xff]
      %v404 = vld [vmem:[%s369 + $0x40] sm:$0xff]
      %v405 = vld [vmem:[%s369 + $0x48] sm:$0xff]
      %v406 = vld [vmem:[%s369 + $0x50] sm:$0xff]
      %v407 = vld [vmem:[%s369 + $0x58] sm:$0xff]
      %v408 = vld [vmem:[%s369 + $0x60] sm:$0xff]
      %v409 = vld [vmem:[%s369 + $0x68] sm:$0xff]
      %v410 = vld [vmem:[%s369 + $0x70] sm:$0xff]
      %v411 = vld [vmem:[%s369 + $0x78] sm:$0xff]
      %v412 = vld [vmem:[%s3] sm:$0xff]
      %v413 = vld [vmem:[%s3 + $0x8] sm:$0xff]
      %v414 = vld [vmem:[%s3 + $0x10] sm:$0xff]
      %v415 = vld [vmem:[%s3 + $0x18] sm:$0xff]
      %v416 = vld [vmem:[%s3 + $0x20] sm:$0xff]
      %v417 = vld [vmem:[%s3 + $0x28] sm:$0xff]
      %v418 = vld [vmem:[%s3 + $0x30] sm:$0xff]
      %v419 = vld [vmem:[%s3 + $0x38] sm:$0xff]
      %v420 = vld [vmem:[%s3 + $0x40] sm:$0xff]
      %v421 = vld [vmem:[%s3 + $0x48] sm:$0xff]
      %v422 = vld [vmem:[%s3 + $0x50] sm:$0xff]
      %v423 = vld [vmem:[%s3 + $0x58] sm:$0xff]
      %v424 = vld [vmem:[%s3 + $0x60] sm:$0xff]
      %v425 = vld [vmem:[%s3 + $0x68] sm:$0xff]
      %v426 = vld [vmem:[%s3 + $0x70] sm:$0xff]
      %v427 = vld [vmem:[%s3 + $0x78] sm:$0xff]
      %v428 = vld [vmem:[%s375] sm:$0xff]
      %v429 = vld [vmem:[%s375 + $0x8] sm:$0xff]
      %v430 = vld [vmem:[%s375 + $0x10] sm:$0xff]
      %v431 = vld [vmem:[%s375 + $0x18] sm:$0xff]
      %v432 = vld [vmem:[%s375 + $0x20] sm:$0xff]
      %v433 = vld [vmem:[%s375 + $0x28] sm:$0xff]
      %v434 = vld [vmem:[%s375 + $0x30] sm:$0xff]
      %v435 = vld [vmem:[%s375 + $0x38] sm:$0xff]
      %v436 = vld [vmem:[%s375 + $0x40] sm:$0xff]
      %v437 = vld [vmem:[%s375 + $0x48] sm:$0xff]
      %v438 = vld [vmem:[%s375 + $0x50] sm:$0xff]
      %v439 = vld [vmem:[%s375 + $0x58] sm:$0xff]
      %v440 = vld [vmem:[%s375 + $0x60] sm:$0xff]
      %v441 = vld [vmem:[%s375 + $0x68] sm:$0xff]
      %v442 = vld [vmem:[%s375 + $0x70] sm:$0xff]
      %v443 = vld [vmem:[%s375 + $0x78] sm:$0xff]
      %vm444 = vcmask 523264
      %v446 = vsel %vm444, %v412, 0
      %v449 = vsel %vm444, %v413, 0
      %v452 = vsel %vm444, %v414, 0
      %v455 = vsel %vm444, %v415, 0
      %v458 = vsel %vm444, %v416, 0
      %v461 = vsel %vm444, %v417, 0
      %v464 = vsel %vm444, %v418, 0
      %v467 = vsel %vm444, %v419, 0
      %v470 = vsel %vm444, %v420, 0
      %v473 = vsel %vm444, %v421, 0
      %v476 = vsel %vm444, %v422, 0
      %v479 = vsel %vm444, %v423, 0
      %v482 = vsel %vm444, %v424, 0
      %v485 = vsel %vm444, %v425, 0
      %v488 = vsel %vm444, %v426, 0
      %v491 = vsel %vm444, %v427, 0
      %v494 = vsel %vm444, %v428, 0
      %v497 = vsel %vm444, %v429, 0
      %v500 = vsel %vm444, %v430, 0
      %v503 = vsel %vm444, %v431, 0
      %v506 = vsel %vm444, %v432, 0
      %v509 = vsel %vm444, %v433, 0
      %v512 = vsel %vm444, %v434, 0
      %v515 = vsel %vm444, %v435, 0
      %v518 = vsel %vm444, %v436, 0
      %v521 = vsel %vm444, %v437, 0
      %v524 = vsel %vm444, %v438, 0
      %v527 = vsel %vm444, %v439, 0
      %v530 = vsel %vm444, %v440, 0
      %v533 = vsel %vm444, %v441, 0
      %v536 = vsel %vm444, %v442, 0
      %v539 = vsel %vm444, %v443, 0
      %541 = vmatprep.subr.mxu0 0.0
      %542 = vmatpush1.xpose.msra.mxu0 %v494
      %543 = vmatprep.subr.mxu0 0.0
      %544 = vmatpush1.xpose.msra.mxu0 %v497
      %545 = vmatprep.subr.mxu0 0.0
      %546 = vmatpush1.xpose.msra.mxu0 %v500
      %547 = vmatprep.subr.mxu0 0.0
      %548 = vmatpush1.xpose.msra.mxu0 %v503
      %549 = vmatprep.subr.mxu0 0.0
      %550 = vmatpush1.xpose.msra.mxu0 %v506
      %551 = vmatprep.subr.mxu0 0.0
      %552 = vmatpush1.xpose.msra.mxu0 %v509
      %553 = vmatprep.subr.mxu0 0.0
      %554 = vmatpush1.xpose.msra.mxu0 %v512
      %555 = vmatprep.subr.mxu0 0.0
      %556 = vmatpush1.xpose.msra.mxu0 %v515
      %557 = vmatprep.subr.mxu0 0.0
      %558 = vmatpush1.xpose.msra.mxu0 %v518
      %559 = vmatprep.subr.mxu0 0.0
      %560 = vmatpush1.xpose.msra.mxu0 %v521
      %561 = vmatprep.subr.mxu0 0.0
      %562 = vmatpush1.xpose.msra.mxu0 %v524
      %563 = vmatprep.subr.mxu0 0.0
      %564 = vmatpush1.xpose.msra.mxu0 %v527
      %565 = vmatprep.subr.mxu0 0.0
      %566 = vmatpush1.xpose.msra.mxu0 %v530
      %567 = vmatprep.subr.mxu0 0.0
      %568 = vmatpush1.xpose.msra.mxu0 %v533
      %569 = vmatprep.subr.mxu0 0.0
      %570 = vmatpush1.xpose.msra.mxu0 %v536
      %571 = vmatprep.subr.mxu0 0.0
      %572 = vmatpush1.xpose.msra.mxu0 %v539
      %573 = vmatprep.subr.mxu0 0.0
      %574 = vmatpush1.xpose.msra.mxu0 0.0
      %575 = vmatprep.subr.mxu0 0.0
      %576 = vmatpush1.xpose.msra.mxu0 0.0
      %577 = vmatprep.subr.mxu0 0.0
      %578 = vmatpush1.xpose.msra.mxu0 0.0
      %579 = vmatprep.subr.mxu0 0.0
      %580 = vmatpush1.xpose.msra.mxu0 0.0
      %581 = vmatprep.subr.mxu0 0.0
      %582 = vmatpush1.xpose.msra.mxu0 0.0
      %583 = vmatprep.subr.mxu0 0.0
      %584 = vmatpush1.xpose.msra.mxu0 0.0
      %585 = vmatprep.subr.mxu0 0.0
      %586 = vmatpush1.xpose.msra.mxu0 0.0
      %587 = vmatprep.subr.mxu0 0.0
      %588 = vmatpush1.xpose.msra.mxu0 0.0
      %589 = vmatprep.subr.mxu0 0.0
      %590 = vmatpush1.xpose.msra.mxu0 0.0
      %591 = vmatprep.subr.mxu0 0.0
      %592 = vmatpush1.xpose.msra.mxu0 0.0
      %593 = vmatprep.subr.mxu0 0.0
      %594 = vmatpush1.xpose.msra.mxu0 0.0
      %595 = vmatprep.subr.mxu0 0.0
      %596 = vmatpush1.xpose.msra.mxu0 0.0
      %597 = vmatprep.subr.mxu0 0.0
      %598 = vmatpush1.xpose.msra.mxu0 0.0
      %599 = vmatprep.subr.mxu0 0.0
      %600 = vmatpush1.xpose.msra.mxu0 0.0
      %601 = vmatprep.subr.mxu0 0.0
      %602 = vmatpush1.xpose.msra.mxu0 0.0
      %603 = vmatprep.subr.mxu0 0.0
      %604 = vmatpush1.xpose.msra.mxu0 0.0
      %605 = vmatprep.mubr.f32.mxu0 0.0
      %606 = vmatmul.mubr.f32.gmra.mrb[0].mxu0 %v446
      %v607 = vpop.f32.mrb[0].mxu0
      %v608 = vadd.f32 0.0, %v607
      %v609 = vpop.f32.mrb[0].mxu0
      %610 = vmatprep.mubr.f32.mxu0 0.0
      %611 = vmatmul.mubr.f32.gmra.mrb[0].mxu0 %v449
      %v612 = vpop.f32.mrb[0].mxu0
      %v613 = vadd.f32 0.0, %v612
      %v614 = vpop.f32.mrb[0].mxu0
      %615 = vmatprep.mubr.f32.mxu0 0.0
      %616 = vmatmul.mubr.f32.gmra.mrb[0].mxu0 %v452
      %v617 = vpop.f32.mrb[0].mxu0
      %v618 = vadd.f32 0.0, %v617
      %v619 = vpop.f32.mrb[0].mxu0
      %620 = vmatprep.mubr.f32.mxu0 0.0
      %621 = vmatmul.mubr.f32.gmra.mrb[0].mxu0 %v455
      %v622 = vpop.f32.mrb[0].mxu0
      %v623 = vadd.f32 0.0, %v622
      %v624 = vpop.f32.mrb[0].mxu0
      %625 = vmatprep.mubr.f32.mxu0 0.0
      %626 = vmatmul.mubr.f32.gmra.mrb[0].mxu0 %v458
      %v627 = vpop.f32.mrb[0].mxu0
      %v628 = vadd.f32 0.0, %v627
      %v629 = vpop.f32.mrb[0].mxu0
      %630 = vmatprep.mubr.f32.mxu0 0.0
      %631 = vmatmul.mubr.f32.gmra.mrb[0].mxu0 %v461
      %v632 = vpop.f32.mrb[0].mxu0
      %v633 = vadd.f32 0.0, %v632
      %v634 = vpop.f32.mrb[0].mxu0
      %635 = vmatprep.mubr.f32.mxu0 0.0
      %636 = vmatmul.mubr.f32.gmra.mrb[0].mxu0 %v464
      %v637 = vpop.f32.mrb[0].mxu0
      %v638 = vadd.f32 0.0, %v637
      %v639 = vpop.f32.mrb[0].mxu0
      %640 = vmatprep.mubr.f32.mxu0 0.0
      %641 = vmatmul.mubr.f32.gmra.mrb[0].mxu0 %v467
      %v642 = vpop.f32.mrb[0].mxu0
      %v643 = vadd.f32 0.0, %v642
      %v644 = vpop.f32.mrb[0].mxu0
      %645 = vmatprep.mubr.f32.mxu0 0.0
      %646 = vmatmul.mubr.f32.gmra.mrb[0].mxu0 %v470
      %v647 = vpop.f32.mrb[0].mxu0
      %v648 = vadd.f32 0.0, %v647
      %v649 = vpop.f32.mrb[0].mxu0
      %650 = vmatprep.mubr.f32.mxu0 0.0
      %651 = vmatmul.mubr.f32.gmra.mrb[0].mxu0 %v473
      %v652 = vpop.f32.mrb[0].mxu0
      %v653 = vadd.f32 0.0, %v652
      %v654 = vpop.f32.mrb[0].mxu0
      %655 = vmatprep.mubr.f32.mxu0 0.0
      %656 = vmatmul.mubr.f32.gmra.mrb[0].mxu0 %v476
      %v657 = vpop.f32.mrb[0].mxu0
      %v658 = vadd.f32 0.0, %v657
      %v659 = vpop.f32.mrb[0].mxu0
      %660 = vmatprep.mubr.f32.mxu0 0.0
      %661 = vmatmul.mubr.f32.gmra.mrb[0].mxu0 %v479
      %v662 = vpop.f32.mrb[0].mxu0
      %v663 = vadd.f32 0.0, %v662
      %v664 = vpop.f32.mrb[0].mxu0
      %665 = vmatprep.mubr.f32.mxu0 0.0
      %666 = vmatmul.mubr.f32.gmra.mrb[0].mxu0 %v482
      %v667 = vpop.f32.mrb[0].mxu0
      %v668 = vadd.f32 0.0, %v667
      %v669 = vpop.f32.mrb[0].mxu0
      %670 = vmatprep.mubr.f32.mxu0 0.0
      %671 = vmatmul.mubr.f32.gmra.mrb[0].mxu0 %v485
      %v672 = vpop.f32.mrb[0].mxu0
      %v673 = vadd.f32 0.0, %v672
      %v674 = vpop.f32.mrb[0].mxu0
      %675 = vmatprep.mubr.f32.mxu0 0.0
      %676 = vmatmul.mubr.f32.gmra.mrb[0].mxu0 %v488
      %v677 = vpop.f32.mrb[0].mxu0
      %v678 = vadd.f32 0.0, %v677
      %v679 = vpop.f32.mrb[0].mxu0
      %680 = vmatprep.mubr.f32.mxu0 0.0
      %681 = vmatmul.mubr.f32.gmra.mrb[0].mxu0 %v491
      %v682 = vpop.f32.mrb[0].mxu0
      %v683 = vadd.f32 0.0, %v682
      %v684 = vpop.f32.mrb[0].mxu0
      %685 = vdwg.mxu0
      %v687 = vsel %vm444, %v380, 0
      %v690 = vsel %vm444, %v381, 0
      %v693 = vsel %vm444, %v382, 0
      %v696 = vsel %vm444, %v383, 0
      %v699 = vsel %vm444, %v384, 0
      %v702 = vsel %vm444, %v385, 0
      %v705 = vsel %vm444, %v386, 0
      %v708 = vsel %vm444, %v387, 0
      %v711 = vsel %vm444, %v388, 0
      %v714 = vsel %vm444, %v389, 0
      %v717 = vsel %vm444, %v390, 0
      %v720 = vsel %vm444, %v391, 0
      %v723 = vsel %vm444, %v392, 0
      %v726 = vsel %vm444, %v393, 0
      %v729 = vsel %vm444, %v394, 0
      %v732 = vsel %vm444, %v395, 0
      %v735 = vsel %vm444, %v396, 0
      %v738 = vsel %vm444, %v397, 0
      %v741 = vsel %vm444, %v398, 0
      %v744 = vsel %vm444, %v399, 0
      %v747 = vsel %vm444, %v400, 0
      %v750 = vsel %vm444, %v401, 0
      %v753 = vsel %vm444, %v402, 0
      %v756 = vsel %vm444, %v403, 0
      %v759 = vsel %vm444, %v404, 0
      %v762 = vsel %vm444, %v405, 0
      %v765 = vsel %vm444, %v406, 0
      %v768 = vsel %vm444, %v407, 0
      %v771 = vsel %vm444, %v408, 0
      %v774 = vsel %vm444, %v409, 0
      %v777 = vsel %vm444, %v410, 0
      %v780 = vsel %vm444, %v411, 0
      %782 = vmatprep.subr.mxu0 0.0
      %783 = vmatpush1.xpose.msra.mxu0 %v735
      %784 = vmatprep.subr.mxu0 0.0
      %785 = vmatpush1.xpose.msra.mxu0 %v738
      %786 = vmatprep.subr.mxu0 0.0
      %787 = vmatpush1.xpose.msra.mxu0 %v741
      %788 = vmatprep.subr.mxu0 0.0
      %789 = vmatpush1.xpose.msra.mxu0 %v744
      %790 = vmatprep.subr.mxu0 0.0
      %791 = vmatpush1.xpose.msra.mxu0 %v747
      %792 = vmatprep.subr.mxu0 0.0
      %793 = vmatpush1.xpose.msra.mxu0 %v750
      %794 = vmatprep.subr.mxu0 0.0
      %795 = vmatpush1.xpose.msra.mxu0 %v753
      %796 = vmatprep.subr.mxu0 0.0
      %797 = vmatpush1.xpose.msra.mxu0 %v756
      %798 = vmatprep.subr.mxu0 0.0
      %799 = vmatpush1.xpose.msra.mxu0 %v759
      %800 = vmatprep.subr.mxu0 0.0
      %801 = vmatpush1.xpose.msra.mxu0 %v762
      %802 = vmatprep.subr.mxu0 0.0
      %803 = vmatpush1.xpose.msra.mxu0 %v765
      %804 = vmatprep.subr.mxu0 0.0
      %805 = vmatpush1.xpose.msra.mxu0 %v768
      %806 = vmatprep.subr.mxu0 0.0
      %807 = vmatpush1.xpose.msra.mxu0 %v771
      %808 = vmatprep.subr.mxu0 0.0
      %809 = vmatpush1.xpose.msra.mxu0 %v774
      %810 = vmatprep.subr.mxu0 0.0
      %811 = vmatpush1.xpose.msra.mxu0 %v777
      %812 = vmatprep.subr.mxu0 0.0
      %813 = vmatpush1.xpose.msra.mxu0 %v780
      %814 = vmatprep.subr.mxu0 0.0
      %815 = vmatpush1.xpose.msra.mxu0 0.0
      %816 = vmatprep.subr.mxu0 0.0
      %817 = vmatpush1.xpose.msra.mxu0 0.0
      %818 = vmatprep.subr.mxu0 0.0
      %819 = vmatpush1.xpose.msra.mxu0 0.0
      %820 = vmatprep.subr.mxu0 0.0
      %821 = vmatpush1.xpose.msra.mxu0 0.0
      %822 = vmatprep.subr.mxu0 0.0
      %823 = vmatpush1.xpose.msra.mxu0 0.0
      %824 = vmatprep.subr.mxu0 0.0
      %825 = vmatpush1.xpose.msra.mxu0 0.0
      %826 = vmatprep.subr.mxu0 0.0
      %827 = vmatpush1.xpose.msra.mxu0 0.0
      %828 = vmatprep.subr.mxu0 0.0
      %829 = vmatpush1.xpose.msra.mxu0 0.0
      %830 = vmatprep.subr.mxu0 0.0
      %831 = vmatpush1.xpose.msra.mxu0 0.0
      %832 = vmatprep.subr.mxu0 0.0
      %833 = vmatpush1.xpose.msra.mxu0 0.0
      %834 = vmatprep.subr.mxu0 0.0
      %835 = vmatpush1.xpose.msra.mxu0 0.0
      %836 = vmatprep.subr.mxu0 0.0
      %837 = vmatpush1.xpose.msra.mxu0 0.0
      %838 = vmatprep.subr.mxu0 0.0
      %839 = vmatpush1.xpose.msra.mxu0 0.0
      %840 = vmatprep.subr.mxu0 0.0
      %841 = vmatpush1.xpose.msra.mxu0 0.0
      %842 = vmatprep.subr.mxu0 0.0
      %843 = vmatpush1.xpose.msra.mxu0 0.0
      %844 = vmatprep.subr.mxu0 0.0
      %845 = vmatpush1.xpose.msra.mxu0 0.0
      %846 = vmatprep.mubr.f32.mxu0 0.0
      %847 = vmatmul.mubr.f32.gmra.mrb[0].mxu0 %v687
      %v848 = vpop.f32.mrb[0].mxu0
      %v849 = vadd.f32 %v608, %v848
      %v850 = vpop.f32.mrb[0].mxu0
      %851 = vmatprep.mubr.f32.mxu0 0.0
      %852 = vmatmul.mubr.f32.gmra.mrb[0].mxu0 %v690
      %v853 = vpop.f32.mrb[0].mxu0
      %v854 = vadd.f32 %v613, %v853
      %v855 = vpop.f32.mrb[0].mxu0
      %856 = vmatprep.mubr.f32.mxu0 0.0
      %857 = vmatmul.mubr.f32.gmra.mrb[0].mxu0 %v693
      %v858 = vpop.f32.mrb[0].mxu0
      %v859 = vadd.f32 %v618, %v858
      %v860 = vpop.f32.mrb[0].mxu0
      %861 = vmatprep.mubr.f32.mxu0 0.0
      %862 = vmatmul.mubr.f32.gmra.mrb[0].mxu0 %v696
      %v863 = vpop.f32.mrb[0].mxu0
      %v864 = vadd.f32 %v623, %v863
      %v865 = vpop.f32.mrb[0].mxu0
      %866 = vmatprep.mubr.f32.mxu0 0.0
      %867 = vmatmul.mubr.f32.gmra.mrb[0].mxu0 %v699
      %v868 = vpop.f32.mrb[0].mxu0
      %v869 = vadd.f32 %v628, %v868
      %v870 = vpop.f32.mrb[0].mxu0
      %871 = vmatprep.mubr.f32.mxu0 0.0
      %872 = vmatmul.mubr.f32.gmra.mrb[0].mxu0 %v702
      %v873 = vpop.f32.mrb[0].mxu0
      %v874 = vadd.f32 %v633, %v873
      %v875 = vpop.f32.mrb[0].mxu0
      %876 = vmatprep.mubr.f32.mxu0 0.0
      %877 = vmatmul.mubr.f32.gmra.mrb[0].mxu0 %v705
      %v878 = vpop.f32.mrb[0].mxu0
      %v879 = vadd.f32 %v638, %v878
      %v880 = vpop.f32.mrb[0].mxu0
      %881 = vmatprep.mubr.f32.mxu0 0.0
      %882 = vmatmul.mubr.f32.gmra.mrb[0].mxu0 %v708
      %v883 = vpop.f32.mrb[0].mxu0
      %v884 = vadd.f32 %v643, %v883
      %v885 = vpop.f32.mrb[0].mxu0
      %886 = vmatprep.mubr.f32.mxu0 0.0
      %887 = vmatmul.mubr.f32.gmra.mrb[0].mxu0 %v711
      %v888 = vpop.f32.mrb[0].mxu0
      %v889 = vadd.f32 %v648, %v888
      %v890 = vpop.f32.mrb[0].mxu0
      %891 = vmatprep.mubr.f32.mxu0 0.0
      %892 = vmatmul.mubr.f32.gmra.mrb[0].mxu0 %v714
      %v893 = vpop.f32.mrb[0].mxu0
      %v894 = vadd.f32 %v653, %v893
      %v895 = vpop.f32.mrb[0].mxu0
      %896 = vmatprep.mubr.f32.mxu0 0.0
      %897 = vmatmul.mubr.f32.gmra.mrb[0].mxu0 %v717
      %v898 = vpop.f32.mrb[0].mxu0
      %v899 = vadd.f32 %v658, %v898
      %v900 = vpop.f32.mrb[0].mxu0
      %901 = vmatprep.mubr.f32.mxu0 0.0
      %902 = vmatmul.mubr.f32.gmra.mrb[0].mxu0 %v720
      %v903 = vpop.f32.mrb[0].mxu0
      %v904 = vadd.f32 %v663, %v903
      %v905 = vpop.f32.mrb[0].mxu0
      %906 = vmatprep.mubr.f32.mxu0 0.0
      %907 = vmatmul.mubr.f32.gmra.mrb[0].mxu0 %v723
      %v908 = vpop.f32.mrb[0].mxu0
      %v909 = vadd.f32 %v668, %v908
      %v910 = vpop.f32.mrb[0].mxu0
      %911 = vmatprep.mubr.f32.mxu0 0.0
      %912 = vmatmul.mubr.f32.gmra.mrb[0].mxu0 %v726
      %v913 = vpop.f32.mrb[0].mxu0
      %v914 = vadd.f32 %v673, %v913
      %v915 = vpop.f32.mrb[0].mxu0
      %916 = vmatprep.mubr.f32.mxu0 0.0
      %917 = vmatmul.mubr.f32.gmra.mrb[0].mxu0 %v729
      %v918 = vpop.f32.mrb[0].mxu0
      %v919 = vadd.f32 %v678, %v918
      %v920 = vpop.f32.mrb[0].mxu0
      %921 = vmatprep.mubr.f32.mxu0 0.0
      %922 = vmatmul.mubr.f32.gmra.mrb[0].mxu0 %v732
      %v923 = vpop.f32.mrb[0].mxu0
      %v924 = vadd.f32 %v683, %v923
      %v925 = vpop.f32.mrb[0].mxu0
      %926 = vdwg.mxu0
      %v927 = vld [vmem:[%s4] sm:$0xff]
      %v928 = vld [vmem:[%s4 + $0x8] sm:$0xff]
      %v929 = vld [vmem:[%s4 + $0x10] sm:$0xff]
      %v930 = vld [vmem:[%s4 + $0x18] sm:$0xff]
      %v931 = vld [vmem:[%s4 + $0x20] sm:$0xff]
      %v932 = vld [vmem:[%s4 + $0x28] sm:$0xff]
      %v933 = vld [vmem:[%s4 + $0x30] sm:$0xff]
      %v934 = vld [vmem:[%s4 + $0x38] sm:$0xff]
      %v935 = vld [vmem:[%s4 + $0x40] sm:$0xff]
      %v936 = vld [vmem:[%s4 + $0x48] sm:$0xff]
      %v937 = vld [vmem:[%s4 + $0x50] sm:$0xff]
      %v938 = vld [vmem:[%s4 + $0x58] sm:$0xff]
      %v939 = vld [vmem:[%s4 + $0x60] sm:$0xff]
      %v940 = vld [vmem:[%s4 + $0x68] sm:$0xff]
      %v941 = vld [vmem:[%s4 + $0x70] sm:$0xff]
      %v942 = vld [vmem:[%s4 + $0x78] sm:$0xff]
      %944 = vset.pattern.permute.xlu0 0
      %945 = vperm.xlu0 %944, %v927
      %v946 = vpop.permute.xlu0 %945
      %949 = vset.pattern.permute.xlu0 0
      %950 = vperm.xlu0 %949, %v928
      %v951 = vpop.permute.xlu0 %950
      %954 = vset.pattern.permute.xlu0 0
      %955 = vperm.xlu0 %954, %v929
      %v956 = vpop.permute.xlu0 %955
      %959 = vset.pattern.permute.xlu0 0
      %960 = vperm.xlu0 %959, %v930
      %v961 = vpop.permute.xlu0 %960
      %964 = vset.pattern.permute.xlu0 0
      %965 = vperm.xlu0 %964, %v931
      %v966 = vpop.permute.xlu0 %965
      %969 = vset.pattern.permute.xlu0 0
      %970 = vperm.xlu0 %969, %v932
      %v971 = vpop.permute.xlu0 %970
      %974 = vset.pattern.permute.xlu0 0
      %975 = vperm.xlu0 %974, %v933
      %v976 = vpop.permute.xlu0 %975
      %979 = vset.pattern.permute.xlu0 0
      %980 = vperm.xlu0 %979, %v934
      %v981 = vpop.permute.xlu0 %980
      %984 = vset.pattern.permute.xlu0 0
      %985 = vperm.xlu0 %984, %v935
      %v986 = vpop.permute.xlu0 %985
      %989 = vset.pattern.permute.xlu0 0
      %990 = vperm.xlu0 %989, %v936
      %v991 = vpop.permute.xlu0 %990
      %994 = vset.pattern.permute.xlu0 0
      %995 = vperm.xlu0 %994, %v937
      %v996 = vpop.permute.xlu0 %995
      %999 = vset.pattern.permute.xlu0 0
      %1000 = vperm.xlu0 %999, %v938
      %v1001 = vpop.permute.xlu0 %1000
      %1004 = vset.pattern.permute.xlu0 0
      %1005 = vperm.xlu0 %1004, %v939
      %v1006 = vpop.permute.xlu0 %1005
      %1009 = vset.pattern.permute.xlu0 0
      %1010 = vperm.xlu0 %1009, %v940
      %v1011 = vpop.permute.xlu0 %1010
      %1014 = vset.pattern.permute.xlu0 0
      %1015 = vperm.xlu0 %1014, %v941
      %v1016 = vpop.permute.xlu0 %1015
      %1019 = vset.pattern.permute.xlu0 0
      %1020 = vperm.xlu0 %1019, %v942
      %v1021 = vpop.permute.xlu0 %1020
      %v1023 = vadd.f32 %v849, %v946
      %v1024 = vadd.f32 %v854, %v951
      %v1025 = vadd.f32 %v859, %v956
      %v1026 = vadd.f32 %v864, %v961
      %v1027 = vadd.f32 %v869, %v966
      %v1028 = vadd.f32 %v874, %v971
      %v1029 = vadd.f32 %v879, %v976
      %v1030 = vadd.f32 %v884, %v981
      %v1031 = vadd.f32 %v889, %v986
      %v1032 = vadd.f32 %v894, %v991
      %v1033 = vadd.f32 %v899, %v996
      %v1034 = vadd.f32 %v904, %v1001
      %v1035 = vadd.f32 %v909, %v1006
      %v1036 = vadd.f32 %v914, %v1011
      %v1037 = vadd.f32 %v919, %v1016
      %v1038 = vadd.f32 %v924, %v1021
      %v1039 = vmax.f32 %v1023, 0.0
      %v1040 = vmax.f32 %v1024, 0.0
      %v1041 = vmax.f32 %v1025, 0.0
      %v1042 = vmax.f32 %v1026, 0.0
      %v1043 = vmax.f32 %v1027, 0.0
      %v1044 = vmax.f32 %v1028, 0.0
      %v1045 = vmax.f32 %v1029, 0.0
      %v1046 = vmax.f32 %v1030, 0.0
      %v1047 = vmax.f32 %v1031, 0.0
      %v1048 = vmax.f32 %v1032, 0.0
      %v1049 = vmax.f32 %v1033, 0.0
      %v1050 = vmax.f32 %v1034, 0.0
      %v1051 = vmax.f32 %v1035, 0.0
      %v1052 = vmax.f32 %v1036, 0.0
      %v1053 = vmax.f32 %v1037, 0.0
      %v1054 = vmax.f32 %v1038, 0.0
      %v1055 = vld [vmem:[%s5] sm:$0xff]
      %v1056 = vld [vmem:[%s5 + $0x8] sm:$0xff]
      %v1057 = vld [vmem:[%s5 + $0x10] sm:$0xff]
      %v1058 = vld [vmem:[%s5 + $0x18] sm:$0xff]
      %v1059 = vld [vmem:[%s5 + $0x20] sm:$0xff]
      %v1060 = vld [vmem:[%s5 + $0x28] sm:$0xff]
      %v1061 = vld [vmem:[%s5 + $0x30] sm:$0xff]
      %v1062 = vld [vmem:[%s5 + $0x38] sm:$0xff]
      %v1063 = vld [vmem:[%s6] sm:$0xff]
      %v1064 = vld [vmem:[%s6 + $0x8] sm:$0xff]
      %v1065 = vld [vmem:[%s6 + $0x10] sm:$0xff]
      %v1066 = vld [vmem:[%s6 + $0x18] sm:$0xff]
      %v1067 = vld [vmem:[%s6 + $0x20] sm:$0xff]
      %v1068 = vld [vmem:[%s6 + $0x28] sm:$0xff]
      %v1069 = vld [vmem:[%s6 + $0x30] sm:$0xff]
      %v1070 = vld [vmem:[%s6 + $0x38] sm:$0xff]
      %1072 = vset.pattern.permute.xlu0 0
      %1073 = vperm.xlu0 %1072, %v1063
      %v1074 = vpop.permute.xlu0 %1073
      %1077 = vset.pattern.permute.xlu0 0
      %1078 = vperm.xlu0 %1077, %v1064
      %v1079 = vpop.permute.xlu0 %1078
      %1082 = vset.pattern.permute.xlu0 0
      %1083 = vperm.xlu0 %1082, %v1065
      %v1084 = vpop.permute.xlu0 %1083
      %1087 = vset.pattern.permute.xlu0 0
      %1088 = vperm.xlu0 %1087, %v1066
      %v1089 = vpop.permute.xlu0 %1088
      %1092 = vset.pattern.permute.xlu0 0
      %1093 = vperm.xlu0 %1092, %v1067
      %v1094 = vpop.permute.xlu0 %1093
      %1097 = vset.pattern.permute.xlu0 0
      %1098 = vperm.xlu0 %1097, %v1068
      %v1099 = vpop.permute.xlu0 %1098
      %1102 = vset.pattern.permute.xlu0 0
      %1103 = vperm.xlu0 %1102, %v1069
      %v1104 = vpop.permute.xlu0 %1103
      %1107 = vset.pattern.permute.xlu0 0
      %1108 = vperm.xlu0 %1107, %v1070
      %v1109 = vpop.permute.xlu0 %1108
      %1111 = vmatprep.subr.mxu0 0.0
      %1112 = vmatpush1.msra.mxu0 %v1039
      %1113 = vmatprep.subr.mxu0 0.0
      %1114 = vmatpush1.msra.mxu0 %v1040
      %1115 = vmatprep.subr.mxu0 0.0
      %1116 = vmatpush1.msra.mxu0 %v1041
      %1117 = vmatprep.subr.mxu0 0.0
      %1118 = vmatpush1.msra.mxu0 %v1042
      %1119 = vmatprep.subr.mxu0 0.0
      %1120 = vmatpush1.msra.mxu0 %v1043
      %1121 = vmatprep.subr.mxu0 0.0
      %1122 = vmatpush1.msra.mxu0 %v1044
      %1123 = vmatprep.subr.mxu0 0.0
      %1124 = vmatpush1.msra.mxu0 %v1045
      %1125 = vmatprep.subr.mxu0 0.0
      %1126 = vmatpush1.msra.mxu0 %v1046
      %1127 = vmatprep.subr.mxu0 0.0
      %1128 = vmatpush1.msra.mxu0 %v1047
      %1129 = vmatprep.subr.mxu0 0.0
      %1130 = vmatpush1.msra.mxu0 %v1048
      %1131 = vmatprep.subr.mxu0 0.0
      %1132 = vmatpush1.msra.mxu0 %v1049
      %1133 = vmatprep.subr.mxu0 0.0
      %1134 = vmatpush1.msra.mxu0 %v1050
      %1135 = vmatprep.subr.mxu0 0.0
      %1136 = vmatpush1.msra.mxu0 %v1051
      %1137 = vmatprep.subr.mxu0 0.0
      %1138 = vmatpush1.msra.mxu0 %v1052
      %1139 = vmatprep.subr.mxu0 0.0
      %1140 = vmatpush1.msra.mxu0 %v1053
      %1141 = vmatprep.subr.mxu0 0.0
      %1142 = vmatpush1.msra.mxu0 %v1054
      %1143 = vmatprep.subr.mxu0 0.0
      %1144 = vmatpush1.msra.mxu0 0.0
      %1145 = vmatprep.subr.mxu0 0.0
      %1146 = vmatpush1.msra.mxu0 0.0
      %1147 = vmatprep.subr.mxu0 0.0
      %1148 = vmatpush1.msra.mxu0 0.0
      %1149 = vmatprep.subr.mxu0 0.0
      %1150 = vmatpush1.msra.mxu0 0.0
      %1151 = vmatprep.subr.mxu0 0.0
      %1152 = vmatpush1.msra.mxu0 0.0
      %1153 = vmatprep.subr.mxu0 0.0
      %1154 = vmatpush1.msra.mxu0 0.0
      %1155 = vmatprep.subr.mxu0 0.0
      %1156 = vmatpush1.msra.mxu0 0.0
      %1157 = vmatprep.subr.mxu0 0.0
      %1158 = vmatpush1.msra.mxu0 0.0
      %1159 = vmatprep.subr.mxu0 0.0
      %1160 = vmatpush1.msra.mxu0 0.0
      %1161 = vmatprep.subr.mxu0 0.0
      %1162 = vmatpush1.msra.mxu0 0.0
      %1163 = vmatprep.subr.mxu0 0.0
      %1164 = vmatpush1.msra.mxu0 0.0
      %1165 = vmatprep.subr.mxu0 0.0
      %1166 = vmatpush1.msra.mxu0 0.0
      %1167 = vmatprep.subr.mxu0 0.0
      %1168 = vmatpush1.msra.mxu0 0.0
      %1169 = vmatprep.subr.mxu0 0.0
      %1170 = vmatpush1.msra.mxu0 0.0
      %1171 = vmatprep.subr.mxu0 0.0
      %1172 = vmatpush1.msra.mxu0 0.0
      %1173 = vmatprep.subr.mxu0 0.0
      %1174 = vmatpush1.msra.mxu0 0.0
      %1175 = vmatprep.mubr.f32.mxu0 0.0
      %1176 = vmatmul.mubr.f32.gmra.mrb[0].mxu0 %v1055
      %v1177 = vpop.f32.mrb[0].mxu0
      %v1178 = vadd.f32 %v1074, %v1177
      %v1179 = vpop.f32.mrb[0].mxu0
      %1180 = vmatprep.mubr.f32.mxu0 0.0
      %1181 = vmatmul.mubr.f32.gmra.mrb[0].mxu0 %v1056
      %v1182 = vpop.f32.mrb[0].mxu0
      %v1183 = vadd.f32 %v1079, %v1182
      %v1184 = vpop.f32.mrb[0].mxu0
      %1185 = vmatprep.mubr.f32.mxu0 0.0
      %1186 = vmatmul.mubr.f32.gmra.mrb[0].mxu0 %v1057
      %v1187 = vpop.f32.mrb[0].mxu0
      %v1188 = vadd.f32 %v1084, %v1187
      %v1189 = vpop.f32.mrb[0].mxu0
      %1190 = vmatprep.mubr.f32.mxu0 0.0
      %1191 = vmatmul.mubr.f32.gmra.mrb[0].mxu0 %v1058
      %v1192 = vpop.f32.mrb[0].mxu0
      %v1193 = vadd.f32 %v1089, %v1192
      %v1194 = vpop.f32.mrb[0].mxu0
      %1195 = vmatprep.mubr.f32.mxu0 0.0
      %1196 = vmatmul.mubr.f32.gmra.mrb[0].mxu0 %v1059
      %v1197 = vpop.f32.mrb[0].mxu0
      %v1198 = vadd.f32 %v1094, %v1197
      %v1199 = vpop.f32.mrb[0].mxu0
      %1200 = vmatprep.mubr.f32.mxu0 0.0
      %1201 = vmatmul.mubr.f32.gmra.mrb[0].mxu0 %v1060
      %v1202 = vpop.f32.mrb[0].mxu0
      %v1203 = vadd.f32 %v1099, %v1202
      %v1204 = vpop.f32.mrb[0].mxu0
      %1205 = vmatprep.mubr.f32.mxu0 0.0
      %1206 = vmatmul.mubr.f32.gmra.mrb[0].mxu0 %v1061
      %v1207 = vpop.f32.mrb[0].mxu0
      %v1208 = vadd.f32 %v1104, %v1207
      %v1209 = vpop.f32.mrb[0].mxu0
      %1210 = vmatprep.mubr.f32.mxu0 0.0
      %1211 = vmatmul.mubr.f32.gmra.mrb[0].mxu0 %v1062
      %v1212 = vpop.f32.mrb[0].mxu0
      %v1213 = vadd.f32 %v1109, %v1212
      %v1214 = vpop.f32.mrb[0].mxu0
      %1215 = vdwg.mxu0
      %v1216 = vmax.f32 %v1178, 0.0
      %v1217 = vmax.f32 %v1183, 0.0
      %v1218 = vmax.f32 %v1188, 0.0
      %v1219 = vmax.f32 %v1193, 0.0
      %v1220 = vmax.f32 %v1198, 0.0
      %v1221 = vmax.f32 %v1203, 0.0
      %v1222 = vmax.f32 %v1208, 0.0
      %v1223 = vmax.f32 %v1213, 0.0
      %v1224 = vld [vmem:[%s7] sm:$0xff]
      %v1225 = vld [vmem:[%s7 + $0x8] sm:$0xff]
      %v1226 = vld [vmem:[%s7 + $0x10] sm:$0xff]
      %v1227 = vld [vmem:[%s7 + $0x18] sm:$0xff]
      %v1228 = vld [vmem:[%s8] sm:$0xff]
      %v1229 = vld [vmem:[%s8 + $0x8] sm:$0xff]
      %v1230 = vld [vmem:[%s8 + $0x10] sm:$0xff]
      %v1231 = vld [vmem:[%s8 + $0x18] sm:$0xff]
      %1233 = vset.pattern.permute.xlu0 0
      %1234 = vperm.xlu0 %1233, %v1228
      %v1235 = vpop.permute.xlu0 %1234
      %1238 = vset.pattern.permute.xlu0 0
      %1239 = vperm.xlu0 %1238, %v1229
      %v1240 = vpop.permute.xlu0 %1239
      %1243 = vset.pattern.permute.xlu0 0
      %1244 = vperm.xlu0 %1243, %v1230
      %v1245 = vpop.permute.xlu0 %1244
      %1248 = vset.pattern.permute.xlu0 0
      %1249 = vperm.xlu0 %1248, %v1231
      %v1250 = vpop.permute.xlu0 %1249
      %v1253 = vsel %vm444, %v1224, 0
      %v1256 = vsel %vm444, %v1225, 0
      %v1259 = vsel %vm444, %v1226, 0
      %v1262 = vsel %vm444, %v1227, 0
      %1264 = vmatprep.subr.mxu0 0.0
      %1265 = vmatpush1.msra.mxu0 %v1216
      %1266 = vmatprep.subr.mxu0 0.0
      %1267 = vmatpush1.msra.mxu0 %v1217
      %1268 = vmatprep.subr.mxu0 0.0
      %1269 = vmatpush1.msra.mxu0 %v1218
      %1270 = vmatprep.subr.mxu0 0.0
      %1271 = vmatpush1.msra.mxu0 %v1219
      %1272 = vmatprep.subr.mxu0 0.0
      %1273 = vmatpush1.msra.mxu0 %v1220
      %1274 = vmatprep.subr.mxu0 0.0
      %1275 = vmatpush1.msra.mxu0 %v1221
      %1276 = vmatprep.subr.mxu0 0.0
      %1277 = vmatpush1.msra.mxu0 %v1222
      %1278 = vmatprep.subr.mxu0 0.0
      %1279 = vmatpush1.msra.mxu0 %v1223
      %1280 = vmatprep.subr.mxu0 0.0
      %1281 = vmatpush1.msra.mxu0 0.0
      %1282 = vmatprep.subr.mxu0 0.0
      %1283 = vmatpush1.msra.mxu0 0.0
      %1284 = vmatprep.subr.mxu0 0.0
      %1285 = vmatpush1.msra.mxu0 0.0
      %1286 = vmatprep.subr.mxu0 0.0
      %1287 = vmatpush1.msra.mxu0 0.0
      %1288 = vmatprep.subr.mxu0 0.0
      %1289 = vmatpush1.msra.mxu0 0.0
      %1290 = vmatprep.subr.mxu0 0.0
      %1291 = vmatpush1.msra.mxu0 0.0
      %1292 = vmatprep.subr.mxu0 0.0
      %1293 = vmatpush1.msra.mxu0 0.0
      %1294 = vmatprep.subr.mxu0 0.0
      %1295 = vmatpush1.msra.mxu0 0.0
      %1296 = vmatprep.subr.mxu0 0.0
      %1297 = vmatpush1.msra.mxu0 0.0
      %1298 = vmatprep.subr.mxu0 0.0
      %1299 = vmatpush1.msra.mxu0 0.0
      %1300 = vmatprep.subr.mxu0 0.0
      %1301 = vmatpush1.msra.mxu0 0.0
      %1302 = vmatprep.subr.mxu0 0.0
      %1303 = vmatpush1.msra.mxu0 0.0
      %1304 = vmatprep.subr.mxu0 0.0
      %1305 = vmatpush1.msra.mxu0 0.0
      %1306 = vmatprep.subr.mxu0 0.0
      %1307 = vmatpush1.msra.mxu0 0.0
      %1308 = vmatprep.subr.mxu0 0.0
      %1309 = vmatpush1.msra.mxu0 0.0
      %1310 = vmatprep.subr.mxu0 0.0
      %1311 = vmatpush1.msra.mxu0 0.0
      %1312 = vmatprep.subr.mxu0 0.0
      %1313 = vmatpush1.msra.mxu0 0.0
      %1314 = vmatprep.subr.mxu0 0.0
      %1315 = vmatpush1.msra.mxu0 0.0
      %1316 = vmatprep.subr.mxu0 0.0
      %1317 = vmatpush1.msra.mxu0 0.0
      %1318 = vmatprep.subr.mxu0 0.0
      %1319 = vmatpush1.msra.mxu0 0.0
      %1320 = vmatprep.subr.mxu0 0.0
      %1321 = vmatpush1.msra.mxu0 0.0
      %1322 = vmatprep.subr.mxu0 0.0
      %1323 = vmatpush1.msra.mxu0 0.0
      %1324 = vmatprep.subr.mxu0 0.0
      %1325 = vmatpush1.msra.mxu0 0.0
      %1326 = vmatprep.subr.mxu0 0.0
      %1327 = vmatpush1.msra.mxu0 0.0
      %1328 = vmatprep.mubr.f32.mxu0 0.0
      %1329 = vmatmul.mubr.f32.gmra.mrb[0].mxu0 %v1253
      %v1330 = vpop.f32.mrb[0].mxu0
      %v1331 = vadd.f32 %v1235, %v1330
      %v1332 = vpop.f32.mrb[0].mxu0
      %1333 = vmatprep.mubr.f32.mxu0 0.0
      %1334 = vmatmul.mubr.f32.gmra.mrb[0].mxu0 %v1256
      %v1335 = vpop.f32.mrb[0].mxu0
      %v1336 = vadd.f32 %v1240, %v1335
      %v1337 = vpop.f32.mrb[0].mxu0
      %1338 = vmatprep.mubr.f32.mxu0 0.0
      %1339 = vmatmul.mubr.f32.gmra.mrb[0].mxu0 %v1259
      %v1340 = vpop.f32.mrb[0].mxu0
      %v1341 = vadd.f32 %v1245, %v1340
      %v1342 = vpop.f32.mrb[0].mxu0
      %1343 = vmatprep.mubr.f32.mxu0 0.0
      %1344 = vmatmul.mubr.f32.gmra.mrb[0].mxu0 %v1262
      %v1345 = vpop.f32.mrb[0].mxu0
      %v1346 = vadd.f32 %v1250, %v1345
      %v1347 = vpop.f32.mrb[0].mxu0
      %1348 = vdwg.mxu0
      %v1349 = vmax.f32 %v1331, 0.0
      %v1350 = vmax.f32 %v1336, 0.0
      %v1351 = vmax.f32 %v1341, 0.0
      %v1352 = vmax.f32 %v1346, 0.0
      %v1353 = vld [vmem:[%s9] sm:$0xff]
      %v1354 = vld [vmem:[%s9 + $0x8] sm:$0xff]
      %v1355 = vld [vmem:[%s9 + $0x10] sm:$0xff]
      %v1356 = vld [vmem:[%s9 + $0x18] sm:$0xff]
      %1358 = vset.pattern.permute.xlu0 0
      %1359 = vperm.xlu0 %1358, %v1353
      %v1360 = vpop.permute.xlu0 %1359
      %1363 = vset.pattern.permute.xlu0 0
      %1364 = vperm.xlu0 %1363, %v1354
      %v1365 = vpop.permute.xlu0 %1364
      %1368 = vset.pattern.permute.xlu0 0
      %1369 = vperm.xlu0 %1368, %v1355
      %v1370 = vpop.permute.xlu0 %1369
      %1373 = vset.pattern.permute.xlu0 0
      %1374 = vperm.xlu0 %1373, %v1356
      %v1375 = vpop.permute.xlu0 %1374
      %v1377 = vmul.f32 %v1349, %v1360
      %v1378 = vmul.f32 %v1350, %v1365
      %v1379 = vmul.f32 %v1351, %v1370
      %v1380 = vmul.f32 %v1352, %v1375
      %v1381 = vadd.f32 %v1377, %v1378
      %v1382 = vadd.f32 %v1381, %v1379
      %v1383 = vadd.f32 %v1382, %v1380
      %v1384 = vrot.slane %v1383, 4
      %v1385 = vadd.f32 %v1383, %v1384
      %v1386 = vrot.slane %v1385, 2
      %v1387 = vadd.f32 %v1385, %v1386
      %v1388 = vrot.slane %v1387, 1
      %v1389 = vadd.f32 %v1387, %v1388
      %1390 = vst [vmem:[%s379] sm:$0x1] %v1389
      %p1391 = scmp.lt.s32.totalorder %s21, 1
      %s1392 = scalar_select %p1391, %s21, 1
      %s1393 = scalar_lea.vmem %s10, %s1392
      // Predicated region
      $region61: #{recommender_forward.1} parent=59 // pred_check
        %p1394 = pneg %p259
      $region62: #{recommender_forward.1} parent=59 // pred_check_branch
        %1396 = sbr.rel (%p1394) target = $region64
      $region63: #{recommender_forward.1} parent=59 // pred_region
        _
      $region64: #{recommender_forward.1} parent=59 // pred_fallthru
        _
    $region60: #{recommender_forward.1} parent=5 // pred_fallthru
      _
    %p1397 = scmp.le.s32.totalorder 2, %s16
    // Predicated region
    $region65: #{recommender_forward.1} parent=5 // pred_check
      %p1398 = pneg %p1397
    $region66: #{recommender_forward.1} parent=5 // pred_check_branch
      %1400 = sbr.rel (%p1398) target = $region68
    $region67: #{recommender_forward.1} parent=5 // pred_region
      %s1401 = ssub.s32 %s16, 2
      // Predicated region
      $region69: #{recommender_forward.1} parent=67 // pred_check
        %p1402 = pneg %p265
      $region70: #{recommender_forward.1} parent=67 // pred_check_branch
        %1404 = sbr.rel (%p1402) target = $region72
      $region71: #{recommender_forward.1} parent=67 // pred_region
        %p1405 = scmp.lt.s32.totalorder %s22, 1
        %s1406 = scalar_select %p1405, %s22, 1
        %s1407 = scalar_lea.vmem %s10, %s1406
      $region72: #{recommender_forward.1} parent=67 // pred_fallthru
        _
    $region68: #{recommender_forward.1} parent=5 // pred_fallthru
      _
  $region6: #{recommender_forward.1} parent=0 // loop_footer
    %s20 = sadd.s32 1, %s16
  $region7: #{recommender_forward.1} parent=0 // loop_footer_branch
    %15 = sbr.rel target = $region3
  $region8: #{recommender_forward.1} parent=0 // loop_exit
    _

</llo_original>
